<compile_context>
chip_gen: v7x
topology: tpu7x:2x2x1
jax: 0.10.0
libtpu: 0.0.40
codegen_flags: <defaults>
</compile_context>

<pallas_src>
import functools

import numpy as np

import jax
import jax.numpy as jnp
from jax import lax
from jax.experimental import pallas as pl
from jax.experimental.pallas import tpu as pltpu


def _round_up(x: int, m: int) -> int:
    return ((x + m - 1) // m) * m


def mv_dot_kernel(x1_ref, inp_ref, x2_ref, out_ref, acc_ref, *,
                  n, m, tm, tk, mask_rows, mask_cols):
    """One (row-tile i, reduction-tile k) step of dot(mv(x1, inp), x2).

    x1_ref : (tm, tk)    tile of x1 (native dtype)
    inp_ref: (1, tk)     lane-dense slice of inp
    x2_ref : (tm, 1)     slice of x2
    out_ref: (1, 8, 128) per-row-tile partial (scalar broadcast, written once)
    acc_ref: (tm, 1) f32 per-row accumulator, live across the k axis
    """
    i = pl.program_id(0)
    k = pl.program_id(1)

    @pl.when(k == 0)
    def _init():
        acc_ref[...] = jnp.zeros_like(acc_ref)

    x1 = x1_ref[...].astype(jnp.float32)      # (tm, tk)
    inp = inp_ref[...].astype(jnp.float32)    # (1, tk)
    prod = x1 * inp                           # VPU, lane-dense

    # Mask ragged tails (only emitted when the static shapes require it).
    # The masked `where` discards any garbage (incl. NaN) in the OOB region.
    if mask_rows or mask_cols:
        valid = None
        if mask_rows:
            row_ids = i * tm + lax.broadcasted_iota(jnp.int32, (tm, 1), 0)
            valid = row_ids < n
        if mask_cols:
            col_ids = k * tk + lax.broadcasted_iota(jnp.int32, (1, tk), 1)
            col_ok = col_ids < m
            valid = col_ok if valid is None else (valid & col_ok)
        prod = jnp.where(valid, prod, 0.0)

    # Per-row partial sums (lane reduce); x2 weighting deferred to finalize.
    acc_ref[...] += jnp.sum(prod, axis=-1, keepdims=True)     # (tm, 1) f32

    @pl.when(k == pl.num_programs(1) - 1)
    def _finalize():
        x2 = x2_ref[...].astype(jnp.float32)                  # (tm, 1)
        if mask_rows:
            row_ids = i * tm + lax.broadcasted_iota(jnp.int32, (tm, 1), 0)
            x2 = jnp.where(row_ids < n, x2, 0.0)
        s = jnp.sum(acc_ref[...] * x2)                        # scalar f32
        # Lane-dense, unmasked store of the broadcast scalar partial.
        out_ref[...] = jnp.broadcast_to(s, out_ref.shape).astype(out_ref.dtype)


def _choose_tiles(n, m, itemsize, tm, tk, budget):
    """Pick (tm, tk) honoring the (8, 128)-or-full-dim rule."""
    # Reduction / lane axis: prefer tk == m (whole contiguous HBM rows, gk=1).
    if tk is None:
        if m * itemsize * 8 <= budget:
            tk = m
        else:
            tk = max(128, (budget // (8 * itemsize)) // 128 * 128)
            if tk >= m:
                tk = m
    else:
        tk = _round_up(max(int(tk), 1), 128)
        if tk >= m:
            tk = m

    # Row axis.
    if tm is None:
        rows = max(8, (budget // max(tk * itemsize, 1)) // 8 * 8)
        if rows >= n:
            if n >= 16:
                # Keep >= 2 row tiles so megacore (v7x) has work for both TCs.
                tm = _round_up((n + 1) // 2, 8)
            else:
                tm = n          # full dim (allowed even if not a multiple of 8)
        else:
            tm = rows
    else:
        tm = _round_up(max(int(tm), 1), 8)
        if tm >= n:
            tm = n

    return tm, tk


def mv_dot(x1, x2, inp, *, tm=None, tk=None, block_budget_bytes=8 << 20):
    """Equivalent of torch.dot(torch.mv(x1, inp), x2).

    x1: (N, M), inp: (M,), x2: (N,) -> scalar.
    """
    n, m = x1.shape
    assert inp.shape == (m,)
    assert x2.shape == (n,)

    itemsize = jnp.dtype(x1.dtype).itemsize
    out_dtype = jnp.result_type(x1.dtype, inp.dtype, x2.dtype)

    tm, tk = _choose_tiles(n, m, itemsize, tm, tk, block_budget_bytes)

    gn = pl.cdiv(n, tm)
    gk = pl.cdiv(m, tk)
    mask_rows = (n % tm) != 0
    mask_cols = (tk != m) and ((m % tk) != 0)

    # Raise the scoped VMEM limit enough for double-buffered blocks + slack.
    vmem_need = (2 * tm * tk * itemsize
                 + 2 * tk * jnp.dtype(inp.dtype).itemsize
                 + 2 * tm * jnp.dtype(x2.dtype).itemsize
                 + 2 * 8 * 128 * 4
                 + tm * 4)
    vmem_limit = int(max(vmem_need * 5 // 4, 16 << 20))

    cost = pl.CostEstimate(
        flops=2 * n * m + 2 * n,
        transcendentals=0,
        bytes_accessed=int(n * m * itemsize
                           + m * jnp.dtype(inp.dtype).itemsize
                           + n * jnp.dtype(x2.dtype).itemsize
                           + gn * 8 * 128 * 4),
    )

    kernel = functools.partial(
        mv_dot_kernel, n=n, m=m, tm=tm, tk=tk,
        mask_rows=mask_rows, mask_cols=mask_cols)

    out = pl.pallas_call(
        kernel,
        out_shape=jax.ShapeDtypeStruct((gn, 8, 128), jnp.float32),
        grid_spec=pltpu.PrefetchScalarGridSpec(
            num_scalar_prefetch=0,
            grid=(gn, gk),
            in_specs=[
                pl.BlockSpec((tm, tk), lambda i, k: (i, k)),   # x1 tile
                pl.BlockSpec((1, tk), lambda i, k: (0, k)),    # inp row slab
                pl.BlockSpec((tm, 1), lambda i, k: (i, 0)),    # x2 slice
            ],
            out_specs=pl.BlockSpec((1, 8, 128), lambda i, k: (i, 0, 0)),
            scratch_shapes=[pltpu.VMEM((tm, 1), jnp.float32)],
        ),
        compiler_params=pltpu.CompilerParams(
            dimension_semantics=("parallel", "arbitrary"),
            vmem_limit_bytes=vmem_limit,
        ),
        cost_estimate=cost,
    )(x1, inp.reshape(1, m), x2.reshape(n, 1))

    # Sum the tiny (gn,) vector of per-row-tile partials.
    return jnp.sum(out[:, 0, 0]).astype(out_dtype)


if __name__ == "__main__":
    key = jax.random.PRNGKey(0)
    k1, k2, k3, k4, k5, k6 = jax.random.split(key, 6)

    # Small ragged shapes (exercise row masking + megacore row split, tk == M).
    N, M = 20, 40
    x1 = jax.random.normal(k1, (N, M), dtype=jnp.float32)
    inp = jax.random.normal(k2, (M,), dtype=jnp.float32)
    x2 = jax.random.normal(k3, (N,), dtype=jnp.float32)

    result = mv_dot(x1, x2, inp)
    jax.block_until_ready(result)

    ref = np.dot(
        np.asarray(x1, np.float64) @ np.asarray(inp, np.float64),
        np.asarray(x2, np.float64),
    )
    assert jnp.allclose(result, jnp.float32(ref), rtol=1e-5, atol=1e-3), (
        result, ref)

    # Moderate test: default tiling (tk == M, 2 row tiles, no masks).
    N2, M2 = 640, 1152
    x1b = jax.random.normal(k4, (N2, M2), dtype=jnp.float32)
    inpb = jax.random.normal(k5, (M2,), dtype=jnp.float32)
    x2b = jax.random.normal(k6, (N2,), dtype=jnp.float32)

    result2 = mv_dot(x1b, x2b, inpb)
    jax.block_until_ready(result2)

    ref2 = np.dot(
        np.asarray(x1b, np.float64) @ np.asarray(inpb, np.float64),
        np.asarray(x2b, np.float64),
    )
    assert jnp.allclose(result2, jnp.float32(ref2), rtol=5e-4, atol=5e-2), (
        result2, ref2)

    # Same data with forced small tiles: exercises the multi-step reduction
    # axis, accumulator init/finalize, and both row and column tail masks.
    result3 = mv_dot(x1b, x2b, inpb, tm=96, tk=512)
    jax.block_until_ready(result3)
    assert jnp.allclose(result3, jnp.float32(ref2), rtol=5e-4, atol=5e-2), (
        result3, ref2)

    print("KERNEL_OK")
</pallas_src>

<mosaic_0001>
module attributes {stable_mosaic.version = 11 : i64} {
  func.func @mv_dot_kernel(%arg0: i32, %arg1: i32, %arg2: memref<16x40xf32, #tpu.memory_space<vmem>>, %arg3: memref<1x40xf32, #tpu.memory_space<vmem>>, %arg4: memref<16x1xf32, #tpu.memory_space<vmem>>, %arg5: memref<1x8x128xf32, #tpu.memory_space<vmem>>, %arg6: memref<16x1xf32, #tpu.memory_space<vmem>>) attributes {dimension_semantics = [#tpu.dimension_semantics<parallel>, #tpu.dimension_semantics<arbitrary>], iteration_bounds = array<i64: 2, 1>, scalar_prefetch = 0 : i64, scratch_operands = 1 : i64, tpu.core_type = #tpu.core_type<tc>, window_params = [{transform_indices = @transform_0, window_bounds = array<i64: 16, 40>}, {transform_indices = @transform_1, window_bounds = array<i64: 1, 40>}, {transform_indices = @transform_2, window_bounds = array<i64: 16, 1>}, {transform_indices = @transform_3, window_bounds = array<i64: 1, 8, 128>}]} {
    %c0_i32 = arith.constant 0 : i32
    %0 = arith.cmpi eq, %arg1, %c0_i32 : i32
    %1 = arith.extui %0 : i1 to i32
    %c0_i32_0 = arith.constant 0 : i32
    %2 = arith.cmpi ne, %1, %c0_i32_0 : i32
    scf.if %2 {
      %cst_11 = arith.constant 0.000000e+00 : f32
      %25 = vector.broadcast %cst_11 : f32 to vector<16x1xf32>
      %c0_12 = arith.constant 0 : index
      %c0_13 = arith.constant 0 : index
      %26 = vector.load %arg6[%c0_12, %c0_13] : memref<16x1xf32, #tpu.memory_space<vmem>>, vector<16x1xf32>
      tpu.vector_store %arg6[%c0_12, %c0_13], %25 {strides = array<i32>} : memref<16x1xf32, #tpu.memory_space<vmem>>, vector<16x1xf32>,
    } else {
    }
    %c0 = arith.constant 0 : index
    %c0_1 = arith.constant 0 : index
    %3 = vector.load %arg2[%c0, %c0_1] : memref<16x40xf32, #tpu.memory_space<vmem>>, vector<16x40xf32>
    %c0_2 = arith.constant 0 : index
    %c0_3 = arith.constant 0 : index
    %4 = vector.load %arg3[%c0_2, %c0_3] : memref<1x40xf32, #tpu.memory_space<vmem>>, vector<1x40xf32>
    %5 = vector.broadcast %4 : vector<1x40xf32> to vector<16x40xf32>
    %6 = arith.mulf %3, %5 : vector<16x40xf32>
    %c16_i32 = arith.constant 16 : i32
    %7 = arith.muli %arg0, %c16_i32 : i32
    %8 = tpu.iota {dimensions = array<i32: 0>} : vector<16x1xi32>
    %9 = vector.broadcast %7 : i32 to vector<16x1xi32>
    %10 = arith.addi %9, %8 : vector<16x1xi32>
    %c20_i32 = arith.constant 20 : i32
    %11 = vector.broadcast %c20_i32 : i32 to vector<16x1xi32>
    %12 = arith.cmpi slt, %10, %11 : vector<16x1xi32>
    %cst = arith.constant 0.000000e+00 : f32
    %13 = vector.shape_cast %12 : vector<16x1xi1> to vector<16x1xi1>
    %14 = vector.broadcast %13 : vector<16x1xi1> to vector<16x40xi1>
    %15 = vector.broadcast %cst : f32 to vector<16x40xf32>
    %16 = arith.select %14, %6, %15 : vector<16x40xi1>, vector<16x40xf32>
    %c0_4 = arith.constant 0 : index
    %c0_5 = arith.constant 0 : index
    %17 = vector.load %arg6[%c0_4, %c0_5] : memref<16x1xf32, #tpu.memory_space<vmem>>, vector<16x1xf32>
    %cst_6 = arith.constant dense<0.000000e+00> : vector<16xf32>
    %18 = vector.multi_reduction <add>, %16, %cst_6 [1] : vector<16x40xf32> to vector<16xf32>
    %19 = vector.shape_cast %18 : vector<16xf32> to vector<16x1xf32>
    %20 = arith.addf %17, %19 : vector<16x1xf32>
    %c0_7 = arith.constant 0 : index
    %c0_8 = arith.constant 0 : index
    %21 = vector.load %arg6[%c0_7, %c0_8] : memref<16x1xf32, #tpu.memory_space<vmem>>, vector<16x1xf32>
    tpu.vector_store %arg6[%c0_7, %c0_8], %20 {strides = array<i32>} : memref<16x1xf32, #tpu.memory_space<vmem>>, vector<16x1xf32>,
    %c0_i32_9 = arith.constant 0 : i32
    %22 = arith.cmpi eq, %arg1, %c0_i32_9 : i32
    %23 = arith.extui %22 : i1 to i32
    %c0_i32_10 = arith.constant 0 : i32
    %24 = arith.cmpi ne, %23, %c0_i32_10 : i32
    scf.if %24 {
      %c0_11 = arith.constant 0 : index
      %c0_12 = arith.constant 0 : index
      %25 = vector.load %arg4[%c0_11, %c0_12] : memref<16x1xf32, #tpu.memory_space<vmem>>, vector<16x1xf32>
      %c16_i32_13 = arith.constant 16 : i32
      %26 = arith.muli %arg0, %c16_i32_13 : i32
      %27 = tpu.iota {dimensions = array<i32: 0>} : vector<16x1xi32>
      %28 = vector.broadcast %26 : i32 to vector<16x1xi32>
      %29 = arith.addi %28, %27 : vector<16x1xi32>
      %c20_i32_14 = arith.constant 20 : i32
      %30 = vector.broadcast %c20_i32_14 : i32 to vector<16x1xi32>
      %31 = arith.cmpi slt, %29, %30 : vector<16x1xi32>
      %cst_15 = arith.constant 0.000000e+00 : f32
      %32 = vector.broadcast %cst_15 : f32 to vector<16x1xf32>
      %33 = arith.select %31, %25, %32 : vector<16x1xi1>, vector<16x1xf32>
      %c0_16 = arith.constant 0 : index
      %c0_17 = arith.constant 0 : index
      %34 = vector.load %arg6[%c0_16, %c0_17] : memref<16x1xf32, #tpu.memory_space<vmem>>, vector<16x1xf32>
      %35 = arith.mulf %34, %33 : vector<16x1xf32>
      %36 = vector.shape_cast %35 : vector<16x1xf32> to vector<1x16x1xf32>
      %cst_18 = arith.constant dense<0.000000e+00> : vector<1xf32>
      %37 = vector.multi_reduction <add>, %36, %cst_18 [1, 2] : vector<1x16x1xf32> to vector<1xf32>
      %38 = vector.shape_cast %37 : vector<1xf32> to vector<1x1x1xf32>
      %39 = vector.extract %38[0, 0, 0] : f32 from vector<1x1x1xf32>
      %40 = vector.broadcast %39 : f32 to vector<1x8x128xf32>
      %c0_19 = arith.constant 0 : index
      %c0_20 = arith.constant 0 : index
      %c0_21 = arith.constant 0 : index
      %41 = vector.load %arg5[%c0_19, %c0_20, %c0_21] : memref<1x8x128xf32, #tpu.memory_space<vmem>>, vector<1x8x128xf32>
      tpu.vector_store %arg5[%c0_19, %c0_20, %c0_21], %40 {strides = array<i32>} : memref<1x8x128xf32, #tpu.memory_space<vmem>>, vector<1x8x128xf32>,
    } else {
    }
    return
  }
  func.func @transform_0(%arg0: i32, %arg1: i32) -> (i32, i32) {
    %c0_i32 = arith.constant 0 : i32
    return %arg0, %arg1 : i32, i32
  }
  func.func @transform_1(%arg0: i32, %arg1: i32) -> (i32, i32) {
    %c0_i32 = arith.constant 0 : i32
    %c0_i32_0 = arith.constant 0 : i32
    return %c0_i32, %arg1 : i32, i32
  }
  func.func @transform_2(%arg0: i32, %arg1: i32) -> (i32, i32) {
    %c0_i32 = arith.constant 0 : i32
    %c0_i32_0 = arith.constant 0 : i32
    return %arg0, %c0_i32 : i32, i32
  }
  func.func @transform_3(%arg0: i32, %arg1: i32) -> (i32, i32, i32) {
    %c0_i32 = arith.constant 0 : i32
    %c0_i32_0 = arith.constant 0 : i32
    %c0_i32_1 = arith.constant 0 : i32
    return %arg0, %c0_i32, %c0_i32_0 : i32, i32, i32
  }
}

</mosaic_0001>

<llo_original>
// kernel: tpu_custom_call.1
$region0: #{tpu_custom_call.1}
  #allocation0 [shape = 'u32[]', space=smem, size = 0x4, offset = 0x4, fixed_abs, tag = 'smem constant byte address 0x4 - core index']
  #allocation1 [shape = 'u32[144,128]{1,0:T(1,128)}', space=vmem, size = 0x12000, scoped, tag = 'internal scratch']
  #allocation2 [shape = 'f32[16,1]{1,0:T(8,128)}', space=vmem, size = 0x2000, scoped, tag = 'scratch operand']
  %s0 = inlined_call_operand.vmem [shape: f32[20,40], index: 0, kind: input, shape index: {}]
  %s1 = inlined_call_operand.vmem [shape: f32[1,40], index: 1, kind: input, shape index: {}]
  %s2 = inlined_call_operand.vmem [shape: f32[20,1], index: 2, kind: input, shape index: {}]
  %s3 = inlined_call_operand.hbm [shape: f32[2,8,128], index: 3, kind: output, shape index: {}]
  %s4 = sld [smem:[#allocation0]]
  $region53: #{tpu_custom_call.1} parent=0
    _
  %s6 = ssub.s32 1, %s4
  %s7 = scalar_select 0, %s6, %s4
  $region1: #{tpu_custom_call.1} parent=0
    #allocation3 [shape = 'u8[8192]{0}', space=vmem, size = 0x2000, scoped, tag = 'output window, operand 0']
    #allocation4 [shape = 's32[2]{0}', space=sflag, size = 0x8, scoped, tag = 'scoped memory for tpu_custom_call.1']
    %8 = vsyncpa [#allocation4], 0
    %s9 = scalar_lea.sflag [#allocation4], 1
    %10 = vsyncpa %s9, 0
    loop: start=0, step=1, limit=4
    $region2: #{tpu_custom_call.1} parent=1 // loop_pre_header
      _
    $region3: #{tpu_custom_call.1} parent=1 // loop_header
      %s12 = sphi 0, %s16
      %p13 = scmp.ge.s32.totalorder %s12, 4
      %s19 = sphi 0, %s31
      %s20 = sphi 0, %s27
      %s21 = sphi 0, %s19
      %s22 = sphi 0, %s20
      %s23 = sphi 0, %s21
      %s24 = sphi 0, %s22
      %s36 = sphi 0, %s38
      %s39 = sphi 0, %s36
      %s40 = sphi 0, %s39
      %s56 = sphi 0, %s40
      %s62 = sphi 0, %s64
      %s65 = sphi 0, %s62
      %s66 = sphi 0, %s65
      %s82 = sphi 0, %s66
      %s88 = sphi 0, %s90
      %s91 = sphi 0, %s88
      %s92 = sphi 0, %s91
      %s108 = sphi 0, %s92
      %s114 = sphi 0, %s116
      %s117 = sphi 0, %s114
      %s118 = sphi 0, %s117
      %s134 = sphi 0, %s118
    $region4: #{tpu_custom_call.1} parent=1 // loop_header_branch
      %15 = sbr.rel (%p13) target = $region8
    $region5: #{tpu_custom_call.1} parent=1 // loop_body
      %s17 = ssub.s32 %s12, 1
      %s18 = ssub.s32 %s12, 2
      %s25 = sadd.s32 1, %s20
      %p26 = scmp.ge.s32.totalorder %s25, 1
      %s27 = scalar_select %p26, 0, %s25
      %s28 = sadd.s32 1, %s19
      %s29 = scalar_select %p26, %s28, %s19
      %p30 = scmp.ge.s32.totalorder %s29, 2
      %s31 = scalar_select %p30, 0, %s29
      %s32 = ssub.s32 %s19, %s31
      %s33 = ssub.s32 %s20, %s27
      %s34 = sor.u32 %s32, %s33
      %p35 = scmp.eq.s32.totalorder %s34, 0
      %s37 = sadd.s32 %s36, 1
      %s38 = scalar_select %p35, %s36, %s37
      %p41 = pneg %p35
      %p42 = scmp.eq.s32.totalorder %s12, 1
      %p43 = por %p41, %p42
      %p44 = scmp.ne.s32.totalorder %s36, %s39
      %p45 = scmp.eq.s32.totalorder %s12, 0
      %p46 = por %p44, %p45
      %p47 = scmp.ne.s32.totalorder %s36, %s39
      %p48 = scmp.eq.s32.totalorder %s17, 1
      %p49 = por %p47, %p48
      %p50 = scmp.ne.s32.totalorder %s39, %s40
      %p51 = scmp.eq.s32.totalorder %s17, 0
      %p52 = por %p50, %p51
      %p53 = scmp.ne.s32.totalorder %s39, %s40
      %p54 = scmp.eq.s32.totalorder %s18, 1
      %p55 = por %p53, %p54
      %p57 = scmp.ne.s32.totalorder %s40, %s56
      %p58 = scmp.eq.s32.totalorder %s18, 0
      %p59 = por %p57, %p58
      %s60 = ssub.s32 %s20, %s27
      %p61 = scmp.eq.s32.totalorder %s60, 0
      %s63 = sadd.s32 %s62, 1
      %s64 = scalar_select %p61, %s62, %s63
      %p67 = pneg %p61
      %p68 = scmp.eq.s32.totalorder %s12, 1
      %p69 = por %p67, %p68
      %p70 = scmp.ne.s32.totalorder %s62, %s65
      %p71 = scmp.eq.s32.totalorder %s12, 0
      %p72 = por %p70, %p71
      %p73 = scmp.ne.s32.totalorder %s62, %s65
      %p74 = scmp.eq.s32.totalorder %s17, 1
      %p75 = por %p73, %p74
      %p76 = scmp.ne.s32.totalorder %s65, %s66
      %p77 = scmp.eq.s32.totalorder %s17, 0
      %p78 = por %p76, %p77
      %p79 = scmp.ne.s32.totalorder %s65, %s66
      %p80 = scmp.eq.s32.totalorder %s18, 1
      %p81 = por %p79, %p80
      %p83 = scmp.ne.s32.totalorder %s66, %s82
      %p84 = scmp.eq.s32.totalorder %s18, 0
      %p85 = por %p83, %p84
      %s86 = ssub.s32 %s19, %s31
      %p87 = scmp.eq.s32.totalorder %s86, 0
      %s89 = sadd.s32 %s88, 1
      %s90 = scalar_select %p87, %s88, %s89
      %p93 = pneg %p87
      %p94 = scmp.eq.s32.totalorder %s12, 1
      %p95 = por %p93, %p94
      %p96 = scmp.ne.s32.totalorder %s88, %s91
      %p97 = scmp.eq.s32.totalorder %s12, 0
      %p98 = por %p96, %p97
      %p99 = scmp.ne.s32.totalorder %s88, %s91
      %p100 = scmp.eq.s32.totalorder %s17, 1
      %p101 = por %p99, %p100
      %p102 = scmp.ne.s32.totalorder %s91, %s92
      %p103 = scmp.eq.s32.totalorder %s17, 0
      %p104 = por %p102, %p103
      %p105 = scmp.ne.s32.totalorder %s91, %s92
      %p106 = scmp.eq.s32.totalorder %s18, 1
      %p107 = por %p105, %p106
      %p109 = scmp.ne.s32.totalorder %s92, %s108
      %p110 = scmp.eq.s32.totalorder %s18, 0
      %p111 = por %p109, %p110
      %s112 = ssub.s32 %s19, %s31
      %p113 = scmp.eq.s32.totalorder %s112, 0
      %s115 = sadd.s32 %s114, 1
      %s116 = scalar_select %p113, %s114, %s115
      %p119 = pneg %p113
      %p120 = scmp.eq.s32.totalorder %s12, 1
      %p121 = por %p119, %p120
      %p122 = scmp.ne.s32.totalorder %s114, %s117
      %p123 = scmp.eq.s32.totalorder %s12, 0
      %p124 = por %p122, %p123
      %p125 = scmp.ne.s32.totalorder %s114, %s117
      %p126 = scmp.eq.s32.totalorder %s17, 1
      %p127 = por %p125, %p126
      %p128 = scmp.ne.s32.totalorder %s117, %s118
      %p129 = scmp.eq.s32.totalorder %s17, 0
      %p130 = por %p128, %p129
      %p131 = scmp.ne.s32.totalorder %s117, %s118
      %p132 = scmp.eq.s32.totalorder %s18, 1
      %p133 = por %p131, %p132
      %p135 = scmp.ne.s32.totalorder %s118, %s134
      %p136 = scmp.eq.s32.totalorder %s18, 0
      %p137 = por %p135, %p136
      %p138 = scmp.le.s32.totalorder 1, %s12
      %p139 = scmp.lt.s32.totalorder %s12, 3
      %p140 = pnand %p138, %p139
      %p141 = pneg %p140
      // Predicated region
      $region9: #{tpu_custom_call.1} parent=5 // pred_check
        _
      $region10: #{tpu_custom_call.1} parent=5 // pred_check_branch
        %143 = sbr.rel (%p140) target = $region12
      $region11: #{tpu_custom_call.1} parent=5 // pred_region
        %s144 = ssub.s32 %s12, 1
        // Predicated region
        $region13: #{tpu_custom_call.1} parent=11 // pred_check
          %p145 = pneg %p78
        $region14: #{tpu_custom_call.1} parent=11 // pred_check_branch
          %147 = sbr.rel (%p145) target = $region16
        $region15: #{tpu_custom_call.1} parent=11 // pred_region
          %p148 = scmp.lt.s32.totalorder %s22, 0
          %s149 = scalar_select %p148, %s22, 0
          %s150 = scalar_lea.vmem %s1, %s149
        $region16: #{tpu_custom_call.1} parent=11 // pred_fallthru
          _
      $region12: #{tpu_custom_call.1} parent=5 // pred_fallthru
        _
      %p151 = scmp.lt.s32.totalorder %s12, 2
      // Predicated region
      $region17: #{tpu_custom_call.1} parent=5 // pred_check
        %p152 = pneg %p151
      $region18: #{tpu_custom_call.1} parent=5 // pred_check_branch
        %154 = sbr.rel (%p152) target = $region20
      $region19: #{tpu_custom_call.1} parent=5 // pred_region
        // Predicated region
        $region21: #{tpu_custom_call.1} parent=19 // pred_check
          %p155 = pneg %p46
        $region22: #{tpu_custom_call.1} parent=19 // pred_check_branch
          %157 = sbr.rel (%p155) target = $region24
        $region23: #{tpu_custom_call.1} parent=19 // pred_region
          %s158 = smul.u32 2, %s19
          %s159 = ssub.s32 3, %s158
          %p160 = scmp.lt.s32.totalorder %s159, 2
          %s161 = scalar_select %p160, %s159, 2
          %s162 = smul.u32 128, %s161
          %p163 = scmp.lt.s32.totalorder %s158, 2
          %s164 = scalar_select %p163, %s158, 2
          %p165 = scmp.lt.s32.totalorder %s20, 0
          %s166 = scalar_select %p165, %s20, 0
          %s167 = sadd.s32 %s166, %s164
          %s168 = smul.addr %s167, 8
          %s169 = scalar_lea.vmem %s0, %s168
          %s170 = smul.u32 2, %s19
          %s171 = ssub.s32 3, %s170
          %p172 = scmp.lt.s32.totalorder %s171, 2
          %s173 = scalar_select %p172, %s171, 2
          %s174 = smul.u32 128, %s173
        $region24: #{tpu_custom_call.1} parent=19 // pred_fallthru
          _
        // Predicated region
        $region25: #{tpu_custom_call.1} parent=19 // pred_check
          %p175 = pneg %p98
        $region26: #{tpu_custom_call.1} parent=19 // pred_check_branch
          %177 = sbr.rel (%p175) target = $region28
        $region27: #{tpu_custom_call.1} parent=19 // pred_region
          %s178 = smul.u32 2, %s19
          %s179 = ssub.s32 3, %s178
          %p180 = scmp.lt.s32.totalorder %s179, 2
          %s181 = scalar_select %p180, %s179, 2
          %s182 = smul.u32 128, %s181
          %p183 = scmp.lt.s32.totalorder %s178, 2
          %s184 = scalar_select %p183, %s178, 2
          %s185 = smul.addr %s184, 8
          %s186 = scalar_lea.vmem %s2, %s185
          %s187 = smul.u32 2, %s19
          %s188 = ssub.s32 3, %s187
          %p189 = scmp.lt.s32.totalorder %s188, 2
          %s190 = scalar_select %p189, %s188, 2
          %s191 = smul.u32 128, %s190
        $region28: #{tpu_custom_call.1} parent=19 // pred_fallthru
          _
      $region20: #{tpu_custom_call.1} parent=5 // pred_fallthru
        _
      %p192 = scmp.le.s32.totalorder 1, %s12
      %p193 = scmp.lt.s32.totalorder %s12, 3
      %p194 = pnand %p192, %p193
      %p195 = pneg %p194
      // Predicated region
      $region29: #{tpu_custom_call.1} parent=5 // pred_check
        _
      $region30: #{tpu_custom_call.1} parent=5 // pred_check_branch
        %197 = sbr.rel (%p194) target = $region32
      $region31: #{tpu_custom_call.1} parent=5 // pred_region
        %s198 = ssub.s32 %s12, 1
        %s199 = smul.u32 2, %s21
        %s200 = ssub.s32 3, %s199
        %p201 = scmp.lt.s32.totalorder %s200, 2
        %s202 = scalar_select %p201, %s200, 2
        %s203 = smul.u32 128, %s202
        %p204 = scmp.lt.s32.totalorder %s199, 2
        %s205 = scalar_select %p204, %s199, 2
        %p206 = scmp.lt.s32.totalorder %s22, 0
        %s207 = scalar_select %p206, %s22, 0
        %s208 = sadd.s32 %s207, %s205
        %s209 = smul.addr %s208, 8
        %s210 = scalar_lea.vmem %s0, %s209
        %p211 = pneg %p52
        %p212 = pneg %p49
        %p213 = scmp.lt.s32.totalorder %s22, 0
        %s214 = scalar_select %p213, %s22, 0
        %s215 = scalar_lea.vmem %s1, %s214
        %p216 = pneg %p78
        %p217 = pneg %p75
        %s218 = smul.u32 2, %s21
        %s219 = ssub.s32 3, %s218
        %p220 = scmp.lt.s32.totalorder %s219, 2
        %s221 = scalar_select %p220, %s219, 2
        %s222 = smul.u32 128, %s221
        %p223 = scmp.lt.s32.totalorder %s218, 2
        %s224 = scalar_select %p223, %s218, 2
        %s225 = smul.addr %s224, 8
        %s226 = scalar_lea.vmem %s2, %s225
        %p227 = pneg %p104
        %p228 = pneg %p101
        %p229 = pneg %p130
        %p230 = pneg %p127
        %s231 = sand.u32 %s117, 1
        %s232 = scalar_lea.sflag [#allocation4], %s231
        %s233 = sand.u32 %s117, 1
        %s234 = smul.addr %s233, 8
        %s235 = scalar_lea.vmem [#allocation3], %s234
        %s236 = smul.u32 2, %s21
        %s237 = ssub.s32 3, %s236
        %p238 = scmp.lt.s32.totalorder %s237, 2
        %s239 = scalar_select %p238, %s237, 2
        %s240 = smul.u32 128, %s239
        %p241 = scmp.lt.s32.totalorder %s236, 2
        %s242 = scalar_select %p241, %s236, 2
        %p243 = scmp.lt.s32.totalorder %s22, 0
        %s244 = scalar_select %p243, %s22, 0
        %s245 = sadd.s32 %s244, %s242
        %s246 = smul.addr %s245, 8
        %s247 = scalar_lea.vmem %s0, %s246
        %s248 = smul.u32 2, %s21
        %s249 = ssub.s32 3, %s248
        %p250 = scmp.lt.s32.totalorder %s249, 2
        %s251 = scalar_select %p250, %s249, 2
        %s252 = smul.u32 128, %s251
        %p253 = scmp.lt.s32.totalorder %s22, 0
        %s254 = scalar_select %p253, %s22, 0
        %s255 = scalar_lea.vmem %s1, %s254
        %s256 = smul.u32 2, %s21
        %s257 = ssub.s32 3, %s256
        %p258 = scmp.lt.s32.totalorder %s257, 2
        %s259 = scalar_select %p258, %s257, 2
        %s260 = smul.u32 128, %s259
        %p261 = scmp.lt.s32.totalorder %s256, 2
        %s262 = scalar_select %p261, %s256, 2
        %s263 = smul.addr %s262, 8
        %s264 = scalar_lea.vmem %s2, %s263
        %s265 = smul.u32 2, %s21
        %s266 = ssub.s32 3, %s265
        %p267 = scmp.lt.s32.totalorder %s266, 2
        %s268 = scalar_select %p267, %s266, 2
        %s269 = smul.u32 128, %s268
        %p270 = scmp.eq.s32.totalorder %s22, 0
        // Predicated region
        $region33: #{tpu_custom_call.1} parent=31 // pred_check
          %p271 = pneg %p270
        $region34: #{tpu_custom_call.1} parent=31 // pred_check_branch
          %273 = sbr.rel (%p271) target = $region36
        $region35: #{tpu_custom_call.1} parent=31 // pred_region
          %vm274 = vcmask 7168
          %275 = vst.msk [vmem:[#allocation2] sm:$0xff] %vm274, 0.0
          %276 = vst.msk [vmem:[#allocation2 + $0x8] sm:$0xff] %vm274, 0.0
        $region36: #{tpu_custom_call.1} parent=31 // pred_fallthru
          _
        %v277 = vld [vmem:[%s247] sm:$0xff]
        %v278 = vld [vmem:[%s247 + $0x8] sm:$0xff]
        %v279 = vld [vmem:[%s255] sm:$0x1]
        %v281 = vlaneseq
        %v282 = vshrl.u32 %v281, 7
        %v283 = vsub.s32 0, %v282
        %v284 = vrot.slane %v279, %v283
        %v286 = vmul.f32 %v277, %v284
        %v287 = vmul.f32 %v278, %v284
        %s288 = smul.u32 %s21, 16
        %v289 = vlaneseq
        %v290 = vshrl.u32 %v289, 7
        %v291 = vadd.s32 %v290, 8
        %v292 = vstv %s288
        %v293 = vadd.s32 %v292, %v290
        %v294 = vadd.s32 %v292, %v291
        %vm295 = vcmp.lt.s32.totalorder %v293, 20
        %vm296 = vcmp.lt.s32.totalorder %v294, 20
        %v297 = vsel %vm295, 1, 0
        %v298 = vsel %vm296, 1, 0
        %vm299 = vcmp.eq.s32.totalorder %v297, 1
        %vm300 = vcmp.eq.s32.totalorder %v298, 1
        %v301 = vsel %vm299, %v286, 0.0
        %v302 = vsel %vm300, %v287, 0.0
        %v303 = vld [vmem:[#allocation2] sm:$0xff]
        %v304 = vld [vmem:[#allocation2 + $0x8] sm:$0xff]
        %vm305 = vcmask 326656
        %v306 = vsel %vm305, %v301, 0.0
        %307 = vadd.xlane.f32.xlu0 %v306
        %v308 = vpop.xlane.xlu0 %307
        %v309 = vsel %vm305, %v302, 0.0
        %310 = vadd.xlane.f32.xlu0 %v309
        %v311 = vpop.xlane.xlu0 %310
        %v312 = vadd.f32 %v303, %v308
        %v313 = vadd.f32 %v304, %v311
        %vm314 = vcmask 7168
        %315 = vst.msk [vmem:[#allocation2] sm:$0xff] %vm314, %v312
        %316 = vst.msk [vmem:[#allocation2 + $0x8] sm:$0xff] %vm314, %v313
        // Predicated region
        $region37: #{tpu_custom_call.1} parent=31 // pred_check
          %p317 = pneg %p270
        $region38: #{tpu_custom_call.1} parent=31 // pred_check_branch
          %319 = sbr.rel (%p317) target = $region40
        $region39: #{tpu_custom_call.1} parent=31 // pred_region
          %v320 = vld [vmem:[%s264] sm:$0xff]
          %v321 = vld [vmem:[%s264 + $0x8] sm:$0xff]
          %v322 = vsel %vm295, %v320, 0.0
          %v323 = vsel %vm296, %v321, 0.0
          %v324 = vld [vmem:[#allocation2] sm:$0xff]
          %v325 = vld [vmem:[#allocation2 + $0x8] sm:$0xff]
          %v326 = vmul.f32 %v324, %v322
          %v327 = vmul.f32 %v325, %v323
          %v328 = vsel %vm314, %v326, 0.0
          %v329 = vsel %vm314, %v327, 0.0
          %v330 = vadd.f32 %v328, %v329
          %331 = vadd.xlane.f32.xlu0 %v330
          %v332 = vpop.xlane.xlu0 %331
          %v333 = vrot.slane %v332, 4
          %v334 = vadd.f32 %v332, %v333
          %v335 = vrot.slane %v334, 2
          %v336 = vadd.f32 %v334, %v335
          %v337 = vrot.slane %v336, 1
          %v338 = vadd.f32 %v336, %v337
          %s339 = vtos %v338
          %v340 = vstv %s339
          %341 = vst [vmem:[%s235] sm:$0xff] %v340
        $region40: #{tpu_custom_call.1} parent=31 // pred_fallthru
          _
        %s342 = sand.u32 %s117, 1
        %s343 = scalar_lea.sflag [#allocation4], %s342
        %s344 = sand.u32 %s117, 1
        %s345 = smul.addr %s344, 8
        %s346 = scalar_lea.vmem [#allocation3], %s345
        // Predicated region
        $region41: #{tpu_custom_call.1} parent=31 // pred_check
          %p347 = pneg %p127
        $region42: #{tpu_custom_call.1} parent=31 // pred_check_branch
          %349 = sbr.rel (%p347) target = $region44
        $region43: #{tpu_custom_call.1} parent=31 // pred_region
          %s351 = ssub.s32 128, 128
          %352 = vsyncadd %s343, %s351
          %s353 = smul.addr %s21, 128
          %s354 = scalar_lea.hbm %s3, %s353
          %s356 = sshll.u32 %s346, 4
          %s357 = int_to_ptr.vmem [resolvable:$true] %s356
          %359 = dma.vmem_to_hbm [thread:$0]  %s357, 128, %s354, %s343
        $region44: #{tpu_custom_call.1} parent=31 // pred_fallthru
          _
      $region32: #{tpu_custom_call.1} parent=5 // pred_fallthru
        _
      %p360 = scmp.le.s32.totalorder 2, %s12
      // Predicated region
      $region45: #{tpu_custom_call.1} parent=5 // pred_check
        %p361 = pneg %p360
      $region46: #{tpu_custom_call.1} parent=5 // pred_check_branch
        %363 = sbr.rel (%p361) target = $region48
      $region47: #{tpu_custom_call.1} parent=5 // pred_region
        %s364 = ssub.s32 %s12, 2
        // Predicated region
        $region49: #{tpu_custom_call.1} parent=47 // pred_check
          %p365 = pneg %p133
        $region50: #{tpu_custom_call.1} parent=47 // pred_check_branch
          %367 = sbr.rel (%p365) target = $region52
        $region51: #{tpu_custom_call.1} parent=47 // pred_region
          %s368 = sand.u32 %s118, 1
          %s369 = scalar_lea.sflag [#allocation4], %s368
          %s370 = sand.u32 %s118, 1
          %s371 = smul.addr %s370, 8
          %s372 = scalar_lea.vmem [#allocation3], %s371
          %373 = dma.done %s369, 128
        $region52: #{tpu_custom_call.1} parent=47 // pred_fallthru
          _
      $region48: #{tpu_custom_call.1} parent=5 // pred_fallthru
        _
    $region6: #{tpu_custom_call.1} parent=1 // loop_footer
      %s16 = sadd.s32 1, %s12
    $region7: #{tpu_custom_call.1} parent=1 // loop_footer_branch
      %11 = sbr.rel target = $region3
    $region8: #{tpu_custom_call.1} parent=1 // loop_exit
      _
    %374 = vsyncpa [#allocation4], 1
    %s375 = scalar_lea.sflag [#allocation4], 1
    %376 = vsyncpa %s375, 1

</llo_original>
